<compile_context>
chip_gen: v6e
topology: v6e:2x2x1
jax: 0.10.0
libtpu: 0.0.40
codegen_flags: <defaults>
</compile_context>

<pallas_src>
import numpy as np
import jax
import jax.numpy as jnp
from jax import lax
from jax.experimental import pallas as pl
from jax.experimental.pallas import tpu as pltpu

# ---- small, module-consistent shapes ----
B, L, E = 2, 16, 32          # batch, sequence length, embed_dim
C = 64                       # conv_dim (module default)
H = C // 2                   # linear_in output dim
NB = 2                       # num_blocks (module default)
N = L * L                    # flattened pairwise map size (lane axis)
EPS = 1e-5                   # InstanceNorm2d default eps
INV_N = 1.0 / N

# 3x3 tap offsets, t = ki*3 + kj, (di, dj) = (ki-1, kj-1); t == 4 is the center.
TAP_OFFSETS = [(ki - 1, kj - 1) for ki in range(3) for kj in range(3)]
NON_CENTER = [t for t in range(9) if t != 4]


# ---------------------------------------------------------------------------
# pltpu.roll convention probe (one tiny kernel, run once at setup)
# ---------------------------------------------------------------------------
def _roll_probe_kernel(x_ref, o_ref):
    o_ref[...] = pltpu.roll(x_ref[...], shift=1, axis=1)


def detect_np_roll_convention():
    """True iff pltpu.roll(x, s, a) matches np.roll(x, s, a)."""
    x = jnp.arange(8 * 128, dtype=jnp.float32).reshape(8, 128)
    y = pl.pallas_call(
        _roll_probe_kernel,
        out_shape=jax.ShapeDtypeStruct((8, 128), jnp.float32),
    )(x)
    y = np.asarray(jax.block_until_ready(y))
    xn = np.asarray(x)
    if np.array_equal(y, np.roll(xn, 1, axis=1)):
        return True
    if np.array_equal(y, np.roll(xn, -1, axis=1)):
        return False
    raise RuntimeError("unexpected pltpu.roll semantics")


def make_tap_shifts(np_convention):
    """Per-tap non-negative lane-roll amounts s.t. rolled[:, p] = x[:, (p+d) % N]."""
    shifts = []
    for di, dj in TAP_OFFSETS:
        d = di * L + dj
        shifts.append(((-d) % N) if np_convention else (d % N))
    return tuple(shifts)


# ---------------------------------------------------------------------------
# Pallas kernel: one grid step per batch element, whole forward pass fused.
# ---------------------------------------------------------------------------
def make_ssp_kernel(shifts):
    f32 = jnp.float32
    bf16 = jnp.bfloat16

    def ssp_kernel(xt_ref, wlin_ref, blin_ref, r1_ref, r2_ref, m_ref,
                   wa_ref, wbc_ref, wbs_ref, wc_ref, wo_ref, o_ref, stk_ref):

        def mm(a, b):
            return jnp.dot(a, b, preferred_element_type=f32)

        def inorm(h):
            # One-pass InstanceNorm2d (affine=False): both lane reductions issue
            # back-to-back; var = E[x^2] - mu^2 clamped >= 0 (f32 throughout).
            s1 = jnp.sum(h, axis=1, keepdims=True)
            s2 = jnp.sum(h * h, axis=1, keepdims=True)
            mu = s1 * INV_N
            var = jnp.maximum(s2 * INV_N - mu * mu, 0.0)
            return (h - mu) * lax.rsqrt(var + EPS)

        def rolled(v, t):  # shifted view: rolled[:, p] = v[:, p + d_t] (mod N)
            return pltpu.roll(v, shift=shifts[t], axis=1)

        # linear_in (tiny, kept in f32) + outer_concat via one-hot matmuls
        u = mm(wlin_ref[...], xt_ref[...]) + blin_ref[...]          # (H, L)
        x = jnp.concatenate([mm(u, r1_ref[...]),
                             mm(u, r2_ref[...])], axis=0)           # (C, N)

        # ResNet2D blocks
        for blk in range(NB):
            res = x
            # 1x1 conv -> IN -> ReLU (bf16 MXU operands, f32 accumulate/stats)
            h = jnp.maximum(inorm(mm(wa_ref[blk], x.astype(bf16))), 0.0)

            # 3x3 'same' conv: 8 off-center taps stacked along the contraction
            # axis (depth 8*C = 512, one MXU matmul) + a depth-C matmul for the
            # mask-free center tap.  Slab temporaries die after each store, so
            # vreg pressure stays low.
            h_bf = h.astype(bf16)
            for s, t in enumerate(NON_CENTER):
                stk_ref[pl.ds(s * C, C), :] = (rolled(h, t) * m_ref[t]).astype(bf16)
            acc = mm(wbc_ref[blk], h_bf) + mm(wbs_ref[blk], stk_ref[...])
            h = jnp.maximum(inorm(acc), 0.0)

            # 1x1 conv -> IN -> ReLU
            h = jnp.maximum(inorm(mm(wc_ref[blk], h.astype(bf16))), 0.0)
            x = h + res

        # conv_out (C -> 1 channel, 3x3 'same'); bias added in the wrapper.
        # VPU weighted accumulate (f32) + single sublane reduce; center tap
        # skips the all-ones mask.
        y = x * wo_ref[4]
        for t in NON_CENTER:
            y = y + rolled(x, t) * m_ref[t] * wo_ref[t]
        o_ref[...] = jnp.sum(y, axis=0, keepdims=True)              # (1, N), lane-dense

    return ssp_kernel


def secondary_structure_predictor(x_emb, params, consts, shifts):
    wlin, blin, wa, wbc, wbs, wc, wo, bo = params
    r1, r2, masks = consts
    b = x_emb.shape[0]

    xt = jnp.transpose(x_emb, (0, 2, 1))                            # (B, E, L)

    out = pl.pallas_call(
        make_ssp_kernel(shifts),
        grid=(b,),
        in_specs=[
            pl.BlockSpec((None, E, L), lambda i: (i, 0, 0)),        # x_emb^T per batch
            pl.BlockSpec((H, E), lambda i: (0, 0)),                 # linear_in weight
            pl.BlockSpec((H, 1), lambda i: (0, 0)),                 # linear_in bias
            pl.BlockSpec((L, N), lambda i: (0, 0)),                 # R1 one-hot (i = p//L)
            pl.BlockSpec((L, N), lambda i: (0, 0)),                 # R2 one-hot (j = p%L)
            pl.BlockSpec((9, 1, N), lambda i: (0, 0, 0)),           # 3x3 boundary masks
            pl.BlockSpec((NB, C, C), lambda i: (0, 0, 0)),          # block conv1 (1x1) bf16
            pl.BlockSpec((NB, C, C), lambda i: (0, 0, 0)),          # block conv2 center tap bf16
            pl.BlockSpec((NB, C, 8 * C), lambda i: (0, 0, 0)),      # block conv2 stacked taps bf16
            pl.BlockSpec((NB, C, C), lambda i: (0, 0, 0)),          # block conv3 (1x1) bf16
            pl.BlockSpec((9, C, 1), lambda i: (0, 0, 0)),           # conv_out weight (f32)
        ],
        out_specs=pl.BlockSpec((None, 1, N), lambda i: (i, 0, 0)),
        out_shape=jax.ShapeDtypeStruct((b, 1, N), jnp.float32),
        scratch_shapes=[pltpu.VMEM((8 * C, N), jnp.bfloat16)],      # stacked-tap operand (256 KB)
        compiler_params=pltpu.CompilerParams(
            dimension_semantics=("parallel",),    # batch across v7x's 2 TCs
            vmem_limit_bytes=16 * 1024 * 1024,    # real footprint ~1 MB; fits all chips
        ),
    )(xt, wlin, blin, r1, r2, masks, wa, wbc, wbs, wc, wo)

    # conv_out bias, triu(diagonal=1) and symmetrization: trivial on a 16x16 map.
    y = out[:, 0, :].reshape(b, L, L) + bo
    yu = jnp.triu(y, k=1)
    return yu + jnp.transpose(yu, (0, 2, 1))


# ---------------------------------------------------------------------------
# Deterministic parameter init (torch-shaped), converted to kernel layout.
# ---------------------------------------------------------------------------
def make_params():
    key = jax.random.PRNGKey(0)
    ks = jax.random.split(key, 3 + 3 * NB + 2)

    def init(k, shape, fan_in):
        return (jax.random.normal(k, shape, jnp.float32) / np.sqrt(fan_in)).astype(jnp.float32)

    w_lin = init(ks[0], (H, E), E)                 # nn.Linear weight (out, in)
    b_lin = init(ks[1], (H,), E)
    w1 = [init(ks[2 + 3 * k], (C, C, 1, 1), C) for k in range(NB)]        # OIHW
    w2 = [init(ks[3 + 3 * k], (C, C, 3, 3), C * 9) for k in range(NB)]    # OIHW
    w3 = [init(ks[4 + 3 * k], (C, C, 1, 1), C) for k in range(NB)]        # OIHW
    w_out = init(ks[2 + 3 * NB], (1, C, 3, 3), C * 9)                     # OIHW
    b_out = init(ks[3 + 3 * NB], (1,), C * 9)

    torch_shaped = (w_lin, b_lin, w1, w2, w3, w_out, b_out)

    # kernel-layout conversions
    wlin = w_lin                                                          # (H, E)  f32
    blin = b_lin[:, None]                                                 # (H, 1)  f32
    wa = jnp.stack([w1[k][:, :, 0, 0] for k in range(NB)]).astype(jnp.bfloat16)   # (NB,C,C)
    wc = jnp.stack([w3[k][:, :, 0, 0] for k in range(NB)]).astype(jnp.bfloat16)   # (NB,C,C)
    wbc = jnp.stack([w2[k][:, :, 1, 1] for k in range(NB)]).astype(jnp.bfloat16)  # center tap
    wbs = jnp.stack([
        jnp.concatenate([w2[k][:, :, t // 3, t % 3] for t in NON_CENTER], axis=1)
        for k in range(NB)]).astype(jnp.bfloat16)                         # (NB, C, 8C)
    wo = jnp.stack([w_out[0, :, ki, kj][:, None]
                    for ki in range(3) for kj in range(3)])               # (9, C, 1) f32
    bo = b_out                                                            # (1,)

    kernel_params = (wlin, blin, wa, wbc, wbs, wc, wo, bo)
    return torch_shaped, kernel_params


def make_constants():
    idx = np.arange(N)
    i, j = idx // L, idx % L
    # outer-concat one-hots (tiny: 2 x 16 KB, two (H,L)@(L,N) matmuls)
    r1 = np.zeros((L, N), np.float32); r1[i, idx] = 1.0        # column p <- row p//L
    r2 = np.zeros((L, N), np.float32); r2[j, idx] = 1.0        # column p <- row p%L
    # 3x3 'same' boundary masks, one (1, N) row per tap (9 KB total)
    masks = np.zeros((9, 1, N), np.float32)
    for ki in range(3):
        for kj in range(3):
            di, dj = ki - 1, kj - 1
            valid = (i + di >= 0) & (i + di < L) & (j + dj >= 0) & (j + dj < L)
            masks[ki * 3 + kj, 0, valid] = 1.0
    return jnp.asarray(r1), jnp.asarray(r2), jnp.asarray(masks)


# ---------------------------------------------------------------------------
# Pure-JAX reference of the PyTorch forward (for correctness check)
# ---------------------------------------------------------------------------
def reference_forward(x_emb, torch_shaped):
    w_lin, b_lin, w1, w2, w3, w_out, b_out = torch_shaped

    def conv(h, w, pad):
        return lax.conv_general_dilated(h, w, (1, 1), ((pad, pad), (pad, pad)),
                                        dimension_numbers=('NCHW', 'OIHW', 'NCHW'))

    def inorm(h):
        m = jnp.mean(h, axis=(2, 3), keepdims=True)
        v = jnp.mean((h - m) ** 2, axis=(2, 3), keepdims=True)
        return (h - m) * lax.rsqrt(v + EPS)

    xl = x_emb @ w_lin.T + b_lin                                  # (B, L, H)
    a = jnp.broadcast_to(xl[:, :, None, :], (x_emb.shape[0], L, L, H))
    b = jnp.broadcast_to(xl[:, None, :, :], (x_emb.shape[0], L, L, H))
    x = jnp.transpose(jnp.concatenate([a, b], axis=-1), (0, 3, 1, 2))  # NCHW
    for k in range(NB):
        res = x
        h = jax.nn.relu(inorm(conv(x, w1[k], 0)))
        h = jax.nn.relu(inorm(conv(h, w2[k], 1)))
        h = jax.nn.relu(inorm(conv(h, w3[k], 0)))
        x = h + res
    y = conv(x, w_out, 1) + b_out[None, :, None, None]
    y = y[:, 0]
    y = jnp.triu(y, k=1)
    return y + jnp.transpose(y, (0, 2, 1))


if __name__ == "__main__":
    torch_shaped, kernel_params = make_params()
    consts = make_constants()
    shifts = make_tap_shifts(detect_np_roll_convention())

    x = jax.random.normal(jax.random.PRNGKey(0), (B, L, E), jnp.float32)

    out = secondary_structure_predictor(x, kernel_params, consts, shifts)
    out = jax.block_until_ready(out)

    ref = jax.block_until_ready(reference_forward(x, torch_shaped))
    # Tolerance sized for bf16 MXU operands (f32 accumulation / statistics);
    # any structural bug (wrong tap, mask, or weight layout) produces O(1) errors.
    np.testing.assert_allclose(np.asarray(out), np.asarray(ref), rtol=3e-2, atol=5e-2)

    print("KERNEL_OK")
</pallas_src>

<mosaic_0001>
module attributes {stable_mosaic.version = 11 : i64} {
  func.func @_roll_probe_kernel(%arg0: memref<8x128xf32, #tpu.memory_space<vmem>>, %arg1: memref<8x128xf32, #tpu.memory_space<vmem>>) attributes {dimension_semantics = [], scalar_prefetch = 0 : i64, scratch_operands = 0 : i64, tpu.core_type = #tpu.core_type<tc>} {
    %c0 = arith.constant 0 : index
    %c0_0 = arith.constant 0 : index
    %0 = vector.load %arg0[%c0, %c0_0] : memref<8x128xf32, #tpu.memory_space<vmem>>, vector<8x128xf32>
    %c1_i32 = arith.constant 1 : i32
    %1 = tpu.dynamic_rotate %0 by %c1_i32 dim 1 : vector<8x128xf32>, i32 -> vector<8x128xf32>
    %c0_1 = arith.constant 0 : index
    %c0_2 = arith.constant 0 : index
    %2 = vector.load %arg1[%c0_1, %c0_2] : memref<8x128xf32, #tpu.memory_space<vmem>>, vector<8x128xf32>
    tpu.vector_store %arg1[%c0_1, %c0_2], %1 {strides = array<i32>} : memref<8x128xf32, #tpu.memory_space<vmem>>, vector<8x128xf32>,
    return
  }
}

</mosaic_0001>

<llo_original>
// kernel: tpu_custom_call.1
$region0: #{tpu_custom_call.1}
  #allocation0 [shape = 'u32[]', space=smem, size = 0x4, offset = 0x4, fixed_abs, tag = 'smem constant byte address 0x4 - core index']
  #allocation1 [shape = 'u32[144,128]{1,0:T(1,128)}', space=vmem, size = 0x12000, scoped, tag = 'internal scratch']
  %s0 = inlined_call_operand.hbm [shape: f32[8,128], index: 0, kind: input, shape index: {}]
  %s1 = inlined_call_operand.hbm [shape: f32[8,128], index: 1, kind: output, shape index: {}]
  %s2 = sld [smem:[#allocation0]]
  $region18: #{tpu_custom_call.1} parent=0
    _
  %s4 = ssub.s32 1, %s2
  %s5 = scalar_select 0, %s4, %s2
  $region1: #{tpu_custom_call.1} parent=0
    #allocation2 [shape = 'u8[4096]{0}', space=vmem, size = 0x1000, scoped, tag = 'input window, operand 0, single buffered']
    #allocation3 [shape = 's32[1]{0}', space=sflag, size = 0x4, scoped, tag = 'scoped memory for tpu_custom_call.1']
    #allocation4 [shape = 's32[1]{0}', space=sflag, size = 0x4, scoped, tag = 'scoped memory for tpu_custom_call.1']
    #allocation5 [shape = 'u8[4096]{0}', space=vmem, size = 0x1000, scoped, tag = 'output window, operand 0, single buffered']
    %6 = vsyncpa [#allocation3], 0
    %7 = vsyncpa [#allocation4], 0
    // Predicated region
    $region2: #{tpu_custom_call.1} parent=1 // pred_check
      _
    $region3: #{tpu_custom_call.1} parent=1 // pred_check_branch
      %9 = sbr.rel (0) target = $region5
    $region4: #{tpu_custom_call.1} parent=1 // pred_region
      %s11 = ssub.s32 128, 128
      %12 = vsyncadd [#allocation3], %s11
      %s14 = sshll.u32 [#allocation2], 4
      %s15 = int_to_ptr.vmem [resolvable:$true] %s14
      %17 = dma.hbm_to_vmem [thread:$0]  %s0, 128, %s15, [#allocation3]
    $region5: #{tpu_custom_call.1} parent=1 // pred_fallthru
      _
    // Predicated region
    $region6: #{tpu_custom_call.1} parent=1 // pred_check
      _
    $region7: #{tpu_custom_call.1} parent=1 // pred_check_branch
      %19 = sbr.rel (0) target = $region9
    $region8: #{tpu_custom_call.1} parent=1 // pred_region
      %20 = dma.done [#allocation3], 128
    $region9: #{tpu_custom_call.1} parent=1 // pred_fallthru
      _
    %v21 = vld [vmem:[#allocation2] sm:$0xff]
    %22 = vrot.lane.b32.xlu0 %v21, 1
    %v23 = vpop.permute.xlu0 %22
    %24 = vst [vmem:[#allocation5] sm:$0xff] %v23
    // Predicated region
    $region10: #{tpu_custom_call.1} parent=1 // pred_check
      _
    $region11: #{tpu_custom_call.1} parent=1 // pred_check_branch
      %26 = sbr.rel (0) target = $region13
    $region12: #{tpu_custom_call.1} parent=1 // pred_region
      %s28 = ssub.s32 128, 128
      %29 = vsyncadd [#allocation4], %s28
      %s31 = sshll.u32 [#allocation5], 4
      %s32 = int_to_ptr.vmem [resolvable:$true] %s31
      %34 = dma.vmem_to_hbm [thread:$0]  %s32, 128, %s1, [#allocation4]
    $region13: #{tpu_custom_call.1} parent=1 // pred_fallthru
      _
    // Predicated region
    $region14: #{tpu_custom_call.1} parent=1 // pred_check
      _
    $region15: #{tpu_custom_call.1} parent=1 // pred_check_branch
      %36 = sbr.rel (0) target = $region17
    $region16: #{tpu_custom_call.1} parent=1 // pred_region
      %37 = dma.done [#allocation4], 128
    $region17: #{tpu_custom_call.1} parent=1 // pred_fallthru
      _
    %38 = vsyncpa [#allocation3], 1
    %39 = vsyncpa [#allocation4], 1

</llo_original>
